<compile_context>
chip_gen: v7x
topology: tpu7x:2x2x1
jax: 0.10.0
libtpu: 0.0.40
codegen_flags: <defaults>
</compile_context>

<pallas_src>
import jax
import jax.numpy as jnp
from jax.experimental import pallas as pl
from jax.experimental.pallas import tpu as pltpu

_VMEM_LIMIT_BYTES = 48 << 20          # raised vs v5e/v6e defaults, < v7x 64 MiB physical
_BLOCK_TARGET_BYTES = 8 << 20         # ~8 MiB blocks: ~85%+ of HBM copy roofline


def _make_cyclic_shift_kernel(dh: int, dw: int, H: int, W: int):
    """Kernel closure with static (normalized, non-negative) shifts baked in."""
    HW = H * W
    # torch.roll semantics: out[h, w] = in[(h - dh) % H, (w - dw) % W].
    s_main = (dh * W + dw) % HW        # flat rotation used where w >= dw
    s_wrap = (dh * W + dw - W) % HW    # flat rotation used where w <  dw

    def kernel(x_ref, o_ref):
        x = x_ref[...]                                  # (rows, H*W)

        r_main = pltpu.roll(x, shift=s_main, axis=1) if s_main else x
        if dw == 0:
            # Pure H-roll: whole rows stay contiguous -> one flat rotation.
            o_ref[...] = r_main
            return

        r_wrap = pltpu.roll(x, shift=s_wrap, axis=1) if s_wrap else x
        # Single-row mask, broadcast over the block by jnp.where (avoids
        # block_rows x redundant iota/mod/compare VPU work and extra vregs).
        lane = jax.lax.broadcasted_iota(jnp.int32, (1, HW), dimension=1)
        wrap_mask = (lane % W) < dw                     # (1, HW) bool
        o_ref[...] = jnp.where(wrap_mask, r_wrap, r_main)

    return kernel


def _sublane_multiple(itemsize: int) -> int:
    """Sub-32-bit dtypes pack along sublanes: f32->8, bf16->16, int8/fp8->32."""
    return 8 * max(1, 4 // max(itemsize, 1))


def _choose_block_rows(n_rows: int, row_bytes: int, itemsize: int) -> int:
    """Largest dtype-aligned row block that fits the per-block VMEM budget."""
    sub = _sublane_multiple(itemsize)
    budget = min(_BLOCK_TARGET_BYTES, _VMEM_LIMIT_BYTES // 4)   # in+out, 2x buffered
    rows = (budget // max(row_bytes, 1)) // sub * sub
    rows = max(sub, rows)
    return min(n_rows, rows)


def cyclic_shift(x: jax.Array, displacement: int) -> jax.Array:
    """Equivalent of torch.roll(x, shifts=(d, d), dims=(2, 3)) for NCHW x."""
    B, C, H, W = x.shape
    dh = displacement % H                               # Python %: non-negative
    dw = displacement % W

    if dh == 0 and dw == 0:
        return x                                        # no-op shift: free

    N = B * C
    HW = H * W
    itemsize = jnp.dtype(x.dtype).itemsize
    row_bytes = HW * itemsize
    sub = _sublane_multiple(itemsize)

    # Fast path requires a lane-dense flattened row and rows that fit VMEM.
    # Tiny images (masked lanes) or huge rows (roll needs the whole row in one
    # block) go through plain jnp.roll instead of a degraded kernel.
    # TODO(synk): offset-index_map strategy for H*W rows that exceed VMEM budget.
    if HW < 128 or sub * row_bytes > _VMEM_LIMIT_BYTES // 4:
        return jnp.roll(x, shift=(displacement, displacement), axis=(2, 3))

    xf = x.reshape(N, HW)                               # free reshape (contiguous merge)

    block_rows = _choose_block_rows(N, row_bytes, itemsize)
    grid = (pl.cdiv(N, block_rows),)

    kernel = _make_cyclic_shift_kernel(dh, dw, H, W)
    spec = pl.BlockSpec((block_rows, HW), lambda i: (i, 0))

    out = pl.pallas_call(
        kernel,
        out_shape=jax.ShapeDtypeStruct((N, HW), x.dtype),
        grid_spec=pltpu.PrefetchScalarGridSpec(
            num_scalar_prefetch=0,
            grid=grid,
            in_specs=[spec],
            out_specs=spec,
        ),
        compiler_params=pltpu.CompilerParams(
            dimension_semantics=("parallel",),
            vmem_limit_bytes=_VMEM_LIMIT_BYTES,
        ),
        cost_estimate=pl.CostEstimate(
            flops=0,
            transcendentals=0,
            bytes_accessed=2 * N * HW * itemsize,
        ),
    )(xf)

    return out.reshape(B, C, H, W)


if __name__ == "__main__":
    key = jax.random.PRNGKey(0)
    B, C, H, W = 2, 4, 16, 16
    displacement = 3  # CyclicShift(displacement=3)

    x = jax.random.normal(key, (B, C, H, W), dtype=jnp.float32)

    out = cyclic_shift(x, displacement)
    out = jax.block_until_ready(out)

    # Reference check against jnp.roll (same semantics as torch.roll).
    ref = jnp.roll(x, shift=(displacement, displacement), axis=(2, 3))
    assert out.shape == ref.shape and out.dtype == ref.dtype
    assert bool(jnp.all(out == ref))

    # Extra checks: negative shift and bf16 (packed-sublane) path.
    out_neg = jax.block_until_ready(cyclic_shift(x, -5))
    ref_neg = jnp.roll(x, shift=(-5, -5), axis=(2, 3))
    assert bool(jnp.all(out_neg == ref_neg))

    xb = x.astype(jnp.bfloat16)
    out_bf = jax.block_until_ready(cyclic_shift(xb, displacement))
    ref_bf = jnp.roll(xb, shift=(displacement, displacement), axis=(2, 3))
    assert bool(jnp.all(out_bf == ref_bf))

    print("KERNEL_OK")
</pallas_src>

<mosaic_0001>
module attributes {stable_mosaic.version = 11 : i64} {
  func.func @kernel(%arg0: i32, %arg1: memref<8x256xf32, #tpu.memory_space<vmem>>, %arg2: memref<8x256xf32, #tpu.memory_space<vmem>>) attributes {dimension_semantics = [#tpu.dimension_semantics<parallel>], iteration_bounds = array<i64: 1>, scalar_prefetch = 0 : i64, scratch_operands = 0 : i64, tpu.core_type = #tpu.core_type<tc>, window_params = [{transform_indices = @transform_0, window_bounds = array<i64: 8, 256>}, {transform_indices = @transform_1, window_bounds = array<i64: 8, 256>}]} {
    %c0 = arith.constant 0 : index
    %c0_0 = arith.constant 0 : index
    %0 = vector.load %arg1[%c0, %c0_0] : memref<8x256xf32, #tpu.memory_space<vmem>>, vector<8x256xf32>
    %c51_i32 = arith.constant 51 : i32
    %1 = tpu.dynamic_rotate %0 by %c51_i32 dim 1 : vector<8x256xf32>, i32 -> vector<8x256xf32>
    %c35_i32 = arith.constant 35 : i32
    %2 = tpu.dynamic_rotate %0 by %c35_i32 dim 1 : vector<8x256xf32>, i32 -> vector<8x256xf32>
    %3 = tpu.iota {dimensions = array<i32: 1>} : vector<1x256xi32>
    %c16_i32 = arith.constant 16 : i32
    %c0_i32 = arith.constant 0 : i32
    %4 = arith.cmpi eq, %c16_i32, %c0_i32 : i32
    %c1_i32 = arith.constant 1 : i32
    %5 = arith.select %4, %c1_i32, %c16_i32 : i32
    %6 = vector.broadcast %5 : i32 to vector<1x256xi32>
    %7 = arith.remsi %3, %6 : vector<1x256xi32>
    %c0_i32_1 = arith.constant 0 : i32
    %8 = vector.broadcast %c0_i32_1 : i32 to vector<1x256xi32>
    %9 = arith.cmpi ne, %7, %8 : vector<1x256xi32>
    %c0_i32_2 = arith.constant 0 : i32
    %10 = vector.broadcast %c0_i32_2 : i32 to vector<1x256xi32>
    %11 = arith.cmpi slt, %7, %10 : vector<1x256xi32>
    %c0_i32_3 = arith.constant 0 : i32
    %12 = arith.cmpi slt, %5, %c0_i32_3 : i32
    %13 = vector.broadcast %12 : i1 to vector<1x256xi1>
    %14 = vector.broadcast %13 : vector<1x256xi1> to vector<1x256xi1>
    %15 = arith.xori %11, %14 : vector<1x256xi1>
    %16 = arith.andi %15, %9 : vector<1x256xi1>
    %17 = vector.broadcast %5 : i32 to vector<1x256xi32>
    %18 = arith.addi %7, %17 : vector<1x256xi32>
    %19 = arith.select %16, %18, %7 : vector<1x256xi1>, vector<1x256xi32>
    %c3_i32 = arith.constant 3 : i32
    %20 = vector.broadcast %c3_i32 : i32 to vector<1x256xi32>
    %21 = arith.cmpi slt, %19, %20 : vector<1x256xi32>
    %22 = vector.shape_cast %21 : vector<1x256xi1> to vector<1x256xi1>
    %23 = vector.broadcast %22 : vector<1x256xi1> to vector<8x256xi1>
    %24 = arith.select %23, %2, %1 : vector<8x256xi1>, vector<8x256xf32>
    %c0_4 = arith.constant 0 : index
    %c0_5 = arith.constant 0 : index
    %25 = vector.load %arg2[%c0_4, %c0_5] : memref<8x256xf32, #tpu.memory_space<vmem>>, vector<8x256xf32>
    tpu.vector_store %arg2[%c0_4, %c0_5], %24 {strides = array<i32>} : memref<8x256xf32, #tpu.memory_space<vmem>>, vector<8x256xf32>,
    return
  }
  func.func @transform_0(%arg0: i32) -> (i32, i32) {
    %c0_i32 = arith.constant 0 : i32
    %c0_i32_0 = arith.constant 0 : i32
    return %arg0, %c0_i32 : i32, i32
  }
  func.func @transform_1(%arg0: i32) -> (i32, i32) {
    %c0_i32 = arith.constant 0 : i32
    %c0_i32_0 = arith.constant 0 : i32
    return %arg0, %c0_i32 : i32, i32
  }
}

</mosaic_0001>

<llo_original>
// kernel: tpu_custom_call.1
$region0: #{tpu_custom_call.1}
  #allocation0 [shape = 'u32[]', space=smem, size = 0x4, offset = 0x4, fixed_abs, tag = 'smem constant byte address 0x4 - core index']
  #allocation1 [shape = 'u32[144,128]{1,0:T(1,128)}', space=vmem, size = 0x12000, scoped, tag = 'internal scratch']
  %s0 = inlined_call_operand.hbm [shape: f32[8,256], index: 0, kind: input, shape index: {}]
  %s1 = inlined_call_operand.hbm [shape: f32[8,256], index: 1, kind: output, shape index: {}]
  %s2 = sld [smem:[#allocation0]]
  $region18: #{tpu_custom_call.1} parent=0
    _
  %s4 = ssub.s32 1, %s2
  %s5 = scalar_select 0, %s4, %s2
  $region1: #{tpu_custom_call.1} parent=0
    #allocation2 [shape = 'u8[8192]{0}', space=vmem, size = 0x2000, scoped, tag = 'input window, operand 0, single buffered']
    #allocation3 [shape = 's32[1]{0}', space=sflag, size = 0x4, scoped, tag = 'scoped memory for tpu_custom_call.1']
    #allocation4 [shape = 's32[1]{0}', space=sflag, size = 0x4, scoped, tag = 'scoped memory for tpu_custom_call.1']
    #allocation5 [shape = 'u8[8192]{0}', space=vmem, size = 0x2000, scoped, tag = 'output window, operand 0, single buffered']
    %6 = vsyncpa [#allocation3], 0
    %7 = vsyncpa [#allocation4], 0
    // Predicated region
    $region2: #{tpu_custom_call.1} parent=1 // pred_check
      _
    $region3: #{tpu_custom_call.1} parent=1 // pred_check_branch
      %9 = sbr.rel (0) target = $region5
    $region4: #{tpu_custom_call.1} parent=1 // pred_region
      %s11 = ssub.s32 256, 256
      %12 = vsyncadd [#allocation3], %s11
      %s14 = sshll.u32 [#allocation2], 4
      %s15 = int_to_ptr.vmem [resolvable:$true] %s14
      %17 = dma.hbm_to_vmem [thread:$0]  %s0, 256, %s15, [#allocation3]
    $region5: #{tpu_custom_call.1} parent=1 // pred_fallthru
      _
    // Predicated region
    $region6: #{tpu_custom_call.1} parent=1 // pred_check
      _
    $region7: #{tpu_custom_call.1} parent=1 // pred_check_branch
      %19 = sbr.rel (0) target = $region9
    $region8: #{tpu_custom_call.1} parent=1 // pred_region
      %20 = dma.done [#allocation3], 256
    $region9: #{tpu_custom_call.1} parent=1 // pred_fallthru
      _
    %v21 = vld [vmem:[#allocation2] sm:$0xff]
    %v22 = vld [vmem:[#allocation2 + $0x8] sm:$0xff]
    %23 = vrot.lane.b32.xlu0 %v21, 51
    %v24 = vpop.permute.xlu0 %23
    %25 = vrot.lane.b32.xlu0 %v22, 51
    %v26 = vpop.permute.xlu0 %25
    %v27 = vlaneseq
    %v28 = vand.u32 %v27, 127
    %vm29 = vcmp.lt.s32.totalorder %v28, 51
    %v30 = vsel %vm29, %v24, %v26
    %v31 = vsel %vm29, %v26, %v24
    %32 = vrot.lane.b32.xlu0 %v21, 35
    %v33 = vpop.permute.xlu0 %32
    %34 = vrot.lane.b32.xlu0 %v22, 35
    %v35 = vpop.permute.xlu0 %34
    %vm36 = vcmp.lt.s32.totalorder %v28, 35
    %v37 = vsel %vm36, %v33, %v35
    %v38 = vsel %vm36, %v35, %v33
    %v39 = vadd.s32 %v28, 128
    %vm40 = vcmp.lt.s32.totalorder %v28, 0
    %v41 = vsub.s32 0, %v28
    %v42 = vsel %vm40, %v41, %v28
    %v43 = vshrl.u32 %v42, 4
    %v44 = vand.u32 %v42, 15
    %v45 = vsub.s32 0, %v44
    %v46 = vsel %vm40, %v45, %v44
    %vm47 = vcmp.lt.s32.totalorder %v39, 0
    %v48 = vsub.s32 0, %v39
    %v49 = vsel %vm47, %v48, %v39
    %v50 = vshrl.u32 %v49, 4
    %v51 = vand.u32 %v49, 15
    %v52 = vsub.s32 0, %v51
    %v53 = vsel %vm47, %v52, %v51
    %vm54 = vcmp.ne.s32.totalorder %v46, 0
    %vm55 = vcmp.ne.s32.totalorder %v53, 0
    %vm56 = vcmp.lt.s32.totalorder %v46, 0
    %vm57 = vcmp.lt.s32.totalorder %v53, 0
    %vm58 = vmand %vm56, %vm54
    %vm59 = vmand %vm57, %vm55
    %v60 = vadd.s32 %v46, 16
    %v61 = vadd.s32 %v53, 16
    %v62 = vsel %vm58, %v60, %v46
    %v63 = vsel %vm59, %v61, %v53
    %vm64 = vcmp.lt.s32.totalorder %v62, 3
    %vm65 = vcmp.lt.s32.totalorder %v63, 3
    %v66 = vsel %vm64, 1, 0
    %v67 = vsel %vm65, 1, 0
    %vm68 = vcmp.eq.s32.totalorder %v66, 1
    %vm69 = vcmp.eq.s32.totalorder %v67, 1
    %v70 = vsel %vm68, %v38, %v31
    %v71 = vsel %vm69, %v37, %v30
    %72 = vst [vmem:[#allocation5] sm:$0xff] %v70
    %73 = vst [vmem:[#allocation5 + $0x8] sm:$0xff] %v71
    // Predicated region
    $region10: #{tpu_custom_call.1} parent=1 // pred_check
      _
    $region11: #{tpu_custom_call.1} parent=1 // pred_check_branch
      %75 = sbr.rel (0) target = $region13
    $region12: #{tpu_custom_call.1} parent=1 // pred_region
      %s77 = ssub.s32 256, 256
      %78 = vsyncadd [#allocation4], %s77
      %s80 = sshll.u32 [#allocation5], 4
      %s81 = int_to_ptr.vmem [resolvable:$true] %s80
      %83 = dma.vmem_to_hbm [thread:$0]  %s81, 256, %s1, [#allocation4]
    $region13: #{tpu_custom_call.1} parent=1 // pred_fallthru
      _
    // Predicated region
    $region14: #{tpu_custom_call.1} parent=1 // pred_check
      _
    $region15: #{tpu_custom_call.1} parent=1 // pred_check_branch
      %85 = sbr.rel (0) target = $region17
    $region16: #{tpu_custom_call.1} parent=1 // pred_region
      %86 = dma.done [#allocation4], 256
    $region17: #{tpu_custom_call.1} parent=1 // pred_fallthru
      _
    %87 = vsyncpa [#allocation3], 1
    %88 = vsyncpa [#allocation4], 1

</llo_original>
